<compile_context>
chip_gen: v7x
topology: tpu7x:2x2x1
jax: 0.10.0
libtpu: 0.0.40
codegen_flags: <defaults>
</compile_context>

<pallas_src>
import jax
import jax.numpy as jnp
from jax.experimental import pallas as pl
from jax.experimental.pallas import tpu as pltpu


# ---------------------------------------------------------------------------
# Generation-aware block sizing
# ---------------------------------------------------------------------------
def _device_config():
    """Returns (target bytes per block buffer, chip has >1 TensorCore)."""
    try:
        kind = jax.devices()[0].device_kind.lower()
    except Exception:
        kind = ""
    if "v7" in kind:
        return 8 << 20, True      # 3.2 TB/s HBM: amortize per-step overhead; 2 TCs
    if "v6" in kind:
        return 4 << 20, False     # 32 MiB scoped default: room for 4x4 MiB buffers
    if "v5" in kind or "lite" in kind:
        return 2 << 20, False     # 16 MiB scoped default: stay at 4x2 MiB
    return 4 << 20, False


def _choose_layout(n: int, itemsize: int, target_block_bytes: int, multi_core: bool):
    """Pick a lane-dense (rows, lanes) view of the flat array and a row block."""
    lanes = 128
    for cand in (4096, 2048, 1024, 512, 256, 128):
        if n % cand == 0:
            lanes = cand
            break
    sub = max(8, 32 // itemsize)                  # sublane packing: f32=8, bf16=16, i8=32
    rows = pl.cdiv(n, lanes)
    row_bytes = lanes * itemsize
    target_rows = max(sub, (target_block_bytes // row_bytes) // sub * sub)

    if rows <= target_rows:
        # Whole row extent fits one block. On multi-TC chips split large tensors
        # into >=2 grid steps so "parallel" can shard across both cores.
        if multi_core and rows >= 2 * sub and n * itemsize >= (1 << 20):
            block_rows = pl.cdiv(pl.cdiv(rows, 2), sub) * sub
        else:
            block_rows = rows                      # full extent: always a legal block shape
    else:
        block_rows = target_rows                   # partial edge block is masked by Pallas
    return lanes, rows, block_rows


# ---------------------------------------------------------------------------
# Kernels
# ---------------------------------------------------------------------------
def _ones_kernel(o_ref):
    # x.pow(0) == 1 everywhere (torch semantics, incl. NaN bases): write-only.
    o_ref[...] = jnp.ones(o_ref.shape, o_ref.dtype)


def _make_static_pow_kernel(power: float):
    """Kernel with the exponent baked in at trace time (fast path)."""
    p = float(power)

    if p == int(p):
        ip = int(p)

        if ip == 0:
            return _ones_kernel_with_input  # defensive; wrapper uses the no-input fill path

        def kernel(x_ref, o_ref):
            # Exponentiation by squaring in f32: pure VPU multiplies (plus one
            # EUP reciprocal for negative exponents); exact sign for x < 0.
            x = x_ref[...].astype(jnp.float32)
            e = abs(ip)
            result = None
            base = x
            while e > 0:
                if e & 1:
                    result = base if result is None else result * base
                e >>= 1
                if e:
                    base = base * base
            if ip < 0:
                result = pl.reciprocal(result, approx=False)
            o_ref[...] = result.astype(o_ref.dtype)

        return kernel

    def kernel(x_ref, o_ref):
        # Non-integer static exponent: |x|^p with PyTorch-style NaN for x < 0.
        x = x_ref[...].astype(jnp.float32)
        mag = jnp.power(jnp.abs(x), jnp.float32(p))
        out = jnp.where(x < 0, jnp.nan, mag)
        o_ref[...] = out.astype(o_ref.dtype)

    return kernel


def _ones_kernel_with_input(x_ref, o_ref):
    o_ref[...] = jnp.ones(o_ref.shape, o_ref.dtype)


def _dynamic_pow_kernel(p_ref, x_ref, o_ref):
    """Fallback for a traced (non-static) exponent, via scalar prefetch (SMEM)."""
    p = p_ref[0]
    # Exponent-only decisions, computed once on scalars (not per element):
    p_floor = jnp.floor(p)
    is_int = p == p_floor
    is_odd = jnp.mod(jnp.abs(p_floor), 2.0) == 1.0
    # Multiplier applied only where x < 0: -1 (odd int), +1 (even int), NaN (fractional).
    neg_factor = jnp.where(is_int, jnp.where(is_odd, -1.0, 1.0), jnp.nan)

    x = x_ref[...].astype(jnp.float32)
    mag = jnp.power(jnp.abs(x), p)                # exp(p*log|x|) on the EUP
    out = mag * jnp.where(x < 0.0, neg_factor, 1.0)
    o_ref[...] = out.astype(o_ref.dtype)


# ---------------------------------------------------------------------------
# Wrapper (equivalent of Pow.forward)
# ---------------------------------------------------------------------------
def pow_pallas(x: jax.Array, power) -> jax.Array:
    orig_shape = x.shape
    orig_dtype = x.dtype
    n = x.size
    if n == 0:
        return x

    itemsize = jnp.dtype(orig_dtype).itemsize
    target_block_bytes, multi_core = _device_config()
    lanes, rows, block_rows = _choose_layout(n, itemsize, target_block_bytes, multi_core)
    n_total = rows * lanes

    grid = (pl.cdiv(rows, block_rows),)
    block = (block_rows, lanes)
    block_bytes = block_rows * lanes * itemsize
    cparams = pltpu.CompilerParams(
        dimension_semantics=("parallel",),
        # in + out, double-buffered, plus margin; explicit so large v7x tiles compile.
        vmem_limit_bytes=int(max(16 << 20, 4 * block_bytes + (4 << 20))),
    )

    # The module's `power` is a registered buffer -> normally concrete; bake it in.
    if isinstance(power, (bool, int, float)):
        static_power = float(power)
    else:
        try:
            static_power = float(jnp.asarray(power).reshape(()))
        except (TypeError, jax.errors.ConcretizationTypeError):
            static_power = None

    out_spec = pl.BlockSpec(block, lambda i: (i, 0))

    if static_power is not None and static_power == 0.0:
        # Write-only ones kernel: no input BlockSpec, halves HBM traffic.
        out2d = pl.pallas_call(
            _ones_kernel,
            out_shape=jax.ShapeDtypeStruct((rows, lanes), orig_dtype),
            grid=grid,
            in_specs=[],
            out_specs=out_spec,
            compiler_params=cparams,
        )()
    else:
        x_flat = x.reshape(-1)
        if n_total != n:                           # pad only when n % 128 != 0
            x_flat = jnp.pad(x_flat, (0, n_total - n))
        x2d = x_flat.reshape(rows, lanes)

        if static_power is not None:
            out2d = pl.pallas_call(
                _make_static_pow_kernel(static_power),
                out_shape=jax.ShapeDtypeStruct((rows, lanes), orig_dtype),
                grid=grid,
                in_specs=[pl.BlockSpec(block, lambda i: (i, 0))],
                out_specs=out_spec,
                compiler_params=cparams,
            )(x2d)
        else:
            # Fallback: exponent is a traced value (not the normal buffer case).
            power_arr = jnp.asarray(power, dtype=jnp.float32).reshape((1,))
            out2d = pl.pallas_call(
                _dynamic_pow_kernel,
                out_shape=jax.ShapeDtypeStruct((rows, lanes), orig_dtype),
                grid_spec=pltpu.PrefetchScalarGridSpec(
                    num_scalar_prefetch=1,
                    grid=grid,
                    in_specs=[pl.BlockSpec(block, lambda i, p_ref: (i, 0))],
                    out_specs=pl.BlockSpec(block, lambda i, p_ref: (i, 0)),
                ),
                compiler_params=cparams,
            )(power_arr, x2d)

    out_flat = out2d.reshape(-1)
    if n_total != n:
        out_flat = out_flat[:n]
    return out_flat.reshape(orig_shape)


if __name__ == "__main__":
    key = jax.random.PRNGKey(0)
    # Small NCHW activation tensor consistent with the module's elementwise use.
    x = jax.random.normal(key, (2, 4, 16, 16), dtype=jnp.float32)

    # Module __init__ registers `power` as a buffer (concrete at construction).
    power = jnp.asarray(2.0, dtype=jnp.float32)

    y = jax.block_until_ready(pow_pallas(x, power))
    assert y.shape == x.shape and y.dtype == x.dtype
    assert jnp.allclose(y, x * x, atol=1e-6, rtol=1e-6), "power=2 mismatch"

    # Odd integer exponent: negative bases keep their sign (no exp/log NaN).
    y3 = jax.block_until_ready(pow_pallas(x, 3))
    assert jnp.allclose(y3, x * x * x, atol=1e-6, rtol=1e-6), "power=3 mismatch"

    # Negative integer exponent (EUP reciprocal path).
    ym2 = jax.block_until_ready(pow_pallas(x, -2))
    assert jnp.allclose(ym2, 1.0 / (x * x), atol=1e-5, rtol=1e-5), "power=-2 mismatch"

    # power == 0: write-only ones kernel (no input DMA).
    y0 = jax.block_until_ready(pow_pallas(x, 0))
    assert jnp.allclose(y0, jnp.ones_like(x)), "power=0 mismatch"

    # Fractional exponent on a shape whose element count is not a multiple of
    # 128 (exercises the lane-padding path and the masked-edge handling).
    xp = jax.random.uniform(jax.random.PRNGKey(0), (3, 5, 7), dtype=jnp.float32) + 0.1
    yh = jax.block_until_ready(pow_pallas(xp, 0.5))
    assert jnp.allclose(yh, jnp.sqrt(xp), atol=1e-6, rtol=1e-5), "power=0.5 mismatch"

    print("KERNEL_OK")
</pallas_src>

<mosaic_0001>
module attributes {stable_mosaic.version = 11 : i64} {
  func.func @kernel(%arg0: i32, %arg1: memref<1x2048xf32, #tpu.memory_space<vmem>>, %arg2: memref<1x2048xf32, #tpu.memory_space<vmem>>) attributes {dimension_semantics = [#tpu.dimension_semantics<parallel>], iteration_bounds = array<i64: 1>, scalar_prefetch = 0 : i64, scratch_operands = 0 : i64, tpu.core_type = #tpu.core_type<tc>, window_params = [{transform_indices = @transform_0, window_bounds = array<i64: 1, 2048>}, {transform_indices = @transform_1, window_bounds = array<i64: 1, 2048>}]} {
    %c0 = arith.constant 0 : index
    %c0_0 = arith.constant 0 : index
    %0 = vector.load %arg1[%c0, %c0_0] : memref<1x2048xf32, #tpu.memory_space<vmem>>, vector<1x2048xf32>
    %1 = arith.mulf %0, %0 : vector<1x2048xf32>
    %c0_1 = arith.constant 0 : index
    %c0_2 = arith.constant 0 : index
    %2 = vector.load %arg2[%c0_1, %c0_2] : memref<1x2048xf32, #tpu.memory_space<vmem>>, vector<1x2048xf32>
    tpu.vector_store %arg2[%c0_1, %c0_2], %1 {strides = array<i32>} : memref<1x2048xf32, #tpu.memory_space<vmem>>, vector<1x2048xf32>,
    return
  }
  func.func @transform_0(%arg0: i32) -> (i32, i32) {
    %c0_i32 = arith.constant 0 : i32
    %c0_i32_0 = arith.constant 0 : i32
    return %arg0, %c0_i32 : i32, i32
  }
  func.func @transform_1(%arg0: i32) -> (i32, i32) {
    %c0_i32 = arith.constant 0 : i32
    %c0_i32_0 = arith.constant 0 : i32
    return %arg0, %c0_i32 : i32, i32
  }
}

</mosaic_0001>

<llo_original>
// kernel: tpu_custom_call.1
$region0: #{tpu_custom_call.1}
  #allocation0 [shape = 'u32[]', space=smem, size = 0x4, offset = 0x4, fixed_abs, tag = 'smem constant byte address 0x4 - core index']
  #allocation1 [shape = 'u32[144,128]{1,0:T(1,128)}', space=vmem, size = 0x12000, scoped, tag = 'internal scratch']
  %s0 = inlined_call_operand.hbm [shape: f32[1,2048], index: 0, kind: input, shape index: {}]
  %s1 = inlined_call_operand.hbm [shape: f32[1,2048], index: 1, kind: output, shape index: {}]
  %s2 = sld [smem:[#allocation0]]
  $region18: #{tpu_custom_call.1} parent=0
    _
  %s4 = ssub.s32 1, %s2
  %s5 = scalar_select 0, %s4, %s2
  $region1: #{tpu_custom_call.1} parent=0
    #allocation2 [shape = 'u8[8192]{0}', space=vmem, size = 0x2000, scoped, tag = 'input window, operand 0, single buffered']
    #allocation3 [shape = 's32[1]{0}', space=sflag, size = 0x4, scoped, tag = 'scoped memory for tpu_custom_call.1']
    #allocation4 [shape = 's32[1]{0}', space=sflag, size = 0x4, scoped, tag = 'scoped memory for tpu_custom_call.1']
    #allocation5 [shape = 'u8[8192]{0}', space=vmem, size = 0x2000, scoped, tag = 'output window, operand 0, single buffered']
    %6 = vsyncpa [#allocation3], 0
    %7 = vsyncpa [#allocation4], 0
    // Predicated region
    $region2: #{tpu_custom_call.1} parent=1 // pred_check
      _
    $region3: #{tpu_custom_call.1} parent=1 // pred_check_branch
      %9 = sbr.rel (0) target = $region5
    $region4: #{tpu_custom_call.1} parent=1 // pred_region
      %s11 = ssub.s32 256, 256
      %12 = vsyncadd [#allocation3], %s11
      %s14 = sshll.u32 [#allocation2], 4
      %s15 = int_to_ptr.vmem [resolvable:$true] %s14
      %17 = dma.hbm_to_vmem [thread:$0]  %s0, 256, %s15, [#allocation3]
    $region5: #{tpu_custom_call.1} parent=1 // pred_fallthru
      _
    // Predicated region
    $region6: #{tpu_custom_call.1} parent=1 // pred_check
      _
    $region7: #{tpu_custom_call.1} parent=1 // pred_check_branch
      %19 = sbr.rel (0) target = $region9
    $region8: #{tpu_custom_call.1} parent=1 // pred_region
      %20 = dma.done [#allocation3], 256
    $region9: #{tpu_custom_call.1} parent=1 // pred_fallthru
      _
    %v21 = vld [vmem:[#allocation2] sm:$0xff]
    %v22 = vld [vmem:[#allocation2 + $0x8] sm:$0xff]
    %v23 = vmul.f32 %v21, %v21
    %v24 = vmul.f32 %v22, %v22
    %25 = vst [vmem:[#allocation5] sm:$0xff] %v23
    %26 = vst [vmem:[#allocation5 + $0x8] sm:$0xff] %v24
    // Predicated region
    $region10: #{tpu_custom_call.1} parent=1 // pred_check
      _
    $region11: #{tpu_custom_call.1} parent=1 // pred_check_branch
      %28 = sbr.rel (0) target = $region13
    $region12: #{tpu_custom_call.1} parent=1 // pred_region
      %s30 = ssub.s32 256, 256
      %31 = vsyncadd [#allocation4], %s30
      %s33 = sshll.u32 [#allocation5], 4
      %s34 = int_to_ptr.vmem [resolvable:$true] %s33
      %36 = dma.vmem_to_hbm [thread:$0]  %s34, 256, %s1, [#allocation4]
    $region13: #{tpu_custom_call.1} parent=1 // pred_fallthru
      _
    // Predicated region
    $region14: #{tpu_custom_call.1} parent=1 // pred_check
      _
    $region15: #{tpu_custom_call.1} parent=1 // pred_check_branch
      %38 = sbr.rel (0) target = $region17
    $region16: #{tpu_custom_call.1} parent=1 // pred_region
      %39 = dma.done [#allocation4], 256
    $region17: #{tpu_custom_call.1} parent=1 // pred_fallthru
      _
    %40 = vsyncpa [#allocation3], 1
    %41 = vsyncpa [#allocation4], 1

</llo_original>
